<compile_context>
chip_gen: v6e
topology: v6e:2x2x1
jax: 0.10.0
libtpu: 0.0.40
codegen_flags: <defaults>
</compile_context>

<pallas_src>
import jax
import jax.numpy as jnp
from jax import lax
from jax.experimental import pallas as pl
from jax.experimental.pallas import tpu as pltpu


def _fold_bn(gamma, beta, mean, var, eps=1e-5):
    scale = gamma / jnp.sqrt(var + eps)
    bias = beta - mean * scale
    return scale.astype(jnp.float32), bias.astype(jnp.float32)


def _make_kernel(Wimg, L, Cinp, Cout):
    """Kernel closure over the static image width / lane extent / channel sizes."""

    def kernel(x_ref, m_ref, w1_ref, w2_ref, wd_ref, b1_ref, bo_ref,
               out_ref, patches_ref):
        # x_ref       : (Cinp, L)        f32  input; channels on sublanes, n*h*w on lanes
        # m_ref       : (9, L)           f32  per-tap halo validity masks
        # w1_ref      : (Cout, 9*Cinp)   bf16 conv1 weights (bn1 scale folded)
        # w2_ref      : (Cout, 9*Cout)   bf16 conv2 weights (bn2 scale folded)
        # wd_ref      : (Cout, Cinp)     bf16 1x1 downsample weights (bnd scale folded)
        # b1_ref      : (Cout, 1)        f32  bn1 bias
        # bo_ref      : (Cout, 1)        f32  bn2 bias + bnd bias (combined)
        # out_ref     : (Cout, L)        f32
        # patches_ref : (9*max(Cinp,Cout), L) f32 scratch — im2col slab, reused
        masks = [m_ref[t:t + 1, :] for t in range(9)]

        def conv3x3(v, w_ref, C):
            # v: (C, L) f32.  Build the (9*C, L) im2col slab with lane rolls
            # (halo handled by the masks), then a single MXU contraction.
            for kh in range(3):
                for kw in range(3):
                    t = kh * 3 + kw
                    s = (kh - 1) * Wimg + (kw - 1)
                    shifted = v if s == 0 else pltpu.roll(v, (-s) % L, axis=1)
                    if t != 4:                     # centre tap never hits the halo
                        shifted = shifted * masks[t]
                    patches_ref[t * C:(t + 1) * C, :] = shifted
            patches = patches_ref[0:9 * C, :].astype(jnp.bfloat16)
            return jnp.dot(w_ref[...], patches,
                           preferred_element_type=jnp.float32)

        x = x_ref[...]                                            # (Cinp, L) f32

        # conv1 (bn1 scale folded) + bn1 bias + ReLU
        out1 = jnp.maximum(conv3x3(x, w1_ref, Cinp) + b1_ref[...], 0.0)

        # conv2 (bn2 scale folded)
        out2 = conv3x3(out1, w2_ref, Cout)

        # downsample branch: 1x1 conv (bnd scale folded)
        res = jnp.dot(wd_ref[...], x.astype(jnp.bfloat16),
                      preferred_element_type=jnp.float32)

        # residual add + combined biases (bn2 + bnd); no final ReLU
        out_ref[...] = out2 + res + bo_ref[...]

    return kernel


def basic_block_no_relu(x_nchw, p, eps=1e-5):
    """NCHW in / NCHW out (PyTorch convention).  Eval-mode BN, stride-1 convs."""
    N, Cin, H, W = x_nchw.shape
    Cout = p['conv1_w'].shape[0]
    if Cout % 8 != 0:
        raise ValueError("Cout must be a multiple of 8 for this kernel")
    Cinp = -(-Cin // 8) * 8                       # pad input channels to sublane tile

    # Batch chunk per grid step (lane extent = NB*H*W).  The demo problem runs
    # as one step; halve the chunk only if the lane extent would get very large.
    NB = N
    while NB % 2 == 0 and NB * H * W > 16384:
        NB //= 2
    L = NB * H * W
    if (N % NB) or (L % 128):
        raise ValueError("batch/spatial extents must tile into 128-lane multiples")

    f32 = jnp.float32
    x = x_nchw.astype(f32)

    # channels -> sublanes, flattened (n, h, w) -> lanes
    x_t = jnp.transpose(x, (1, 0, 2, 3)).reshape(Cin, N * H * W)
    x_t = jnp.pad(x_t, ((0, Cinp - Cin), (0, 0)))

    # per-tap validity masks for the 3x3 halo (periodic per image, tiled over NB)
    ii = jnp.arange(H, dtype=jnp.int32)
    jj = jnp.arange(W, dtype=jnp.int32)
    rows = []
    for kh in range(3):
        for kw in range(3):
            vi = ((ii + kh - 1 >= 0) & (ii + kh - 1 < H)).astype(f32)
            vj = ((jj + kw - 1 >= 0) & (jj + kw - 1 < W)).astype(f32)
            rows.append(jnp.tile((vi[:, None] * vj[None, :]).reshape(H * W), NB))
    masks = jnp.stack(rows, axis=0)                               # (9, L)

    # fold BN scales into the conv weights; keep only bias adds for the kernel
    s1, b1 = _fold_bn(p['bn1_g'], p['bn1_b'], p['bn1_m'], p['bn1_v'], eps)
    s2, b2 = _fold_bn(p['bn2_g'], p['bn2_b'], p['bn2_m'], p['bn2_v'], eps)
    sd, bd = _fold_bn(p['bnd_g'], p['bnd_b'], p['bnd_m'], p['bnd_v'], eps)

    w1 = p['conv1_w'].astype(f32) * s1[:, None, None, None]       # (Cout,Cin,3,3)
    w1 = jnp.pad(w1, ((0, 0), (0, Cinp - Cin), (0, 0), (0, 0)))
    w1r = jnp.transpose(w1, (0, 2, 3, 1)).reshape(Cout, 9 * Cinp).astype(jnp.bfloat16)

    w2 = p['conv2_w'].astype(f32) * s2[:, None, None, None]       # (Cout,Cout,3,3)
    w2r = jnp.transpose(w2, (0, 2, 3, 1)).reshape(Cout, 9 * Cout).astype(jnp.bfloat16)

    wd = p['down_w'][:, :, 0, 0].astype(f32) * sd[:, None]        # (Cout,Cin)
    wdr = jnp.pad(wd, ((0, 0), (0, Cinp - Cin))).astype(jnp.bfloat16)

    b1c = b1.reshape(Cout, 1)
    boc = (b2 + bd).reshape(Cout, 1)

    kernel = _make_kernel(W, L, Cinp, Cout)

    out_t = pl.pallas_call(
        kernel,
        out_shape=jax.ShapeDtypeStruct((Cout, N * H * W), f32),
        grid=(N // NB,),
        in_specs=[
            pl.BlockSpec((Cinp, L), lambda b: (0, b)),            # x_t
            pl.BlockSpec((9, L), lambda b: (0, 0)),               # masks
            pl.BlockSpec((Cout, 9 * Cinp), lambda b: (0, 0)),     # w1r
            pl.BlockSpec((Cout, 9 * Cout), lambda b: (0, 0)),     # w2r
            pl.BlockSpec((Cout, Cinp), lambda b: (0, 0)),         # wdr
            pl.BlockSpec((Cout, 1), lambda b: (0, 0)),            # bn1 bias
            pl.BlockSpec((Cout, 1), lambda b: (0, 0)),            # bn2+bnd bias
        ],
        out_specs=pl.BlockSpec((Cout, L), lambda b: (0, b)),
        scratch_shapes=[pltpu.VMEM((9 * max(Cinp, Cout), L), f32)],
        compiler_params=pltpu.CompilerParams(
            dimension_semantics=("parallel",)),
    )(x_t, masks, w1r, w2r, wdr, b1c, boc)

    # (Cout, N*H*W) -> NCHW
    return out_t.reshape(Cout, N, H, W).transpose(1, 0, 2, 3)


def _ref_forward(x_nchw, p, eps=1e-5):
    """Pure-JAX reference (mirrors the PyTorch module in eval mode)."""
    def bn(x, g, b, m, v):
        g, b, m, v = (a[None, :, None, None] for a in (g, b, m, v))
        return (x - m) / jnp.sqrt(v + eps) * g + b

    dn = ('NCHW', 'OIHW', 'NCHW')
    out = lax.conv_general_dilated(x_nchw, p['conv1_w'], (1, 1), 'SAME',
                                   dimension_numbers=dn)
    out = jnp.maximum(bn(out, p['bn1_g'], p['bn1_b'], p['bn1_m'], p['bn1_v']), 0.0)
    out = lax.conv_general_dilated(out, p['conv2_w'], (1, 1), 'SAME',
                                   dimension_numbers=dn)
    out = bn(out, p['bn2_g'], p['bn2_b'], p['bn2_m'], p['bn2_v'])
    res = lax.conv_general_dilated(x_nchw, p['down_w'], (1, 1), 'SAME',
                                   dimension_numbers=dn)
    res = bn(res, p['bnd_g'], p['bnd_b'], p['bnd_m'], p['bnd_v'])
    return out + res


def _make_params(key, cin, cout):
    ks = jax.random.split(key, 15)
    f32 = jnp.float32

    def bn_params(k):
        k1, k2, k3, k4 = jax.random.split(k, 4)
        return (1.0 + 0.1 * jax.random.normal(k1, (cout,), f32),   # gamma
                0.1 * jax.random.normal(k2, (cout,), f32),         # beta
                0.1 * jax.random.normal(k3, (cout,), f32),         # running mean
                0.5 + jax.random.uniform(k4, (cout,), f32))        # running var

    g1, b1, m1, v1 = bn_params(ks[1])
    g2, b2, m2, v2 = bn_params(ks[3])
    gd, bd, md, vd = bn_params(ks[5])
    return {
        'conv1_w': 0.1 * jax.random.normal(ks[0], (cout, cin, 3, 3), f32),
        'bn1_g': g1, 'bn1_b': b1, 'bn1_m': m1, 'bn1_v': v1,
        'conv2_w': 0.1 * jax.random.normal(ks[2], (cout, cout, 3, 3), f32),
        'bn2_g': g2, 'bn2_b': b2, 'bn2_m': m2, 'bn2_v': v2,
        'down_w': 0.1 * jax.random.normal(ks[4], (cout, cin, 1, 1), f32),
        'bnd_g': gd, 'bnd_b': bd, 'bnd_m': md, 'bnd_v': vd,
    }


if __name__ == "__main__":
    key = jax.random.PRNGKey(0)
    k_x, k_p = jax.random.split(key)

    N, Cin, H, W = 2, 4, 16, 16
    Cout = 8
    x = jax.random.normal(k_x, (N, Cin, H, W), jnp.float32)   # NCHW, like PyTorch
    params = _make_params(k_p, Cin, Cout)

    out = jax.block_until_ready(basic_block_no_relu(x, params))
    ref = jax.block_until_ready(_ref_forward(x, params))

    assert out.shape == (N, Cout, H, W), out.shape
    err = float(jnp.max(jnp.abs(out - ref)))
    assert jnp.allclose(out, ref, atol=2e-2, rtol=2e-2), err

    print("KERNEL_OK")
</pallas_src>

<mosaic_0001>
module attributes {stable_mosaic.version = 11 : i64} {
  func.func @kernel(%arg0: i32, %arg1: memref<8x512xf32, #tpu.memory_space<vmem>>, %arg2: memref<9x512xf32, #tpu.memory_space<vmem>>, %arg3: memref<8x72xbf16, #tpu.memory_space<vmem>>, %arg4: memref<8x72xbf16, #tpu.memory_space<vmem>>, %arg5: memref<8x8xbf16, #tpu.memory_space<vmem>>, %arg6: memref<8x1xf32, #tpu.memory_space<vmem>>, %arg7: memref<8x1xf32, #tpu.memory_space<vmem>>, %arg8: memref<8x512xf32, #tpu.memory_space<vmem>>, %arg9: memref<72x512xf32, #tpu.memory_space<vmem>>) attributes {dimension_semantics = [#tpu.dimension_semantics<parallel>], iteration_bounds = array<i64: 1>, scalar_prefetch = 0 : i64, scratch_operands = 1 : i64, tpu.core_type = #tpu.core_type<tc>, window_params = [{transform_indices = @transform_0, window_bounds = array<i64: 8, 512>}, {pipeline_mode = #tpu.pipeline_mode<synchronous>, transform_indices = @transform_1, window_bounds = array<i64: 9, 512>}, {pipeline_mode = #tpu.pipeline_mode<synchronous>, transform_indices = @transform_2, window_bounds = array<i64: 8, 72>}, {pipeline_mode = #tpu.pipeline_mode<synchronous>, transform_indices = @transform_3, window_bounds = array<i64: 8, 72>}, {pipeline_mode = #tpu.pipeline_mode<synchronous>, transform_indices = @transform_4, window_bounds = array<i64: 8, 8>}, {pipeline_mode = #tpu.pipeline_mode<synchronous>, transform_indices = @transform_5, window_bounds = array<i64: 8, 1>}, {pipeline_mode = #tpu.pipeline_mode<synchronous>, transform_indices = @transform_6, window_bounds = array<i64: 8, 1>}, {transform_indices = @transform_7, window_bounds = array<i64: 8, 512>}]} {
    %c0 = arith.constant 0 : index
    %c0_0 = arith.constant 0 : index
    %0 = vector.load %arg2[%c0, %c0_0] : memref<9x512xf32, #tpu.memory_space<vmem>>, vector<1x512xf32>
    %c1 = arith.constant 1 : index
    %c0_1 = arith.constant 0 : index
    %1 = vector.load %arg2[%c1, %c0_1] : memref<9x512xf32, #tpu.memory_space<vmem>>, vector<1x512xf32>
    %c2 = arith.constant 2 : index
    %c0_2 = arith.constant 0 : index
    %2 = vector.load %arg2[%c2, %c0_2] : memref<9x512xf32, #tpu.memory_space<vmem>>, vector<1x512xf32>
    %c3 = arith.constant 3 : index
    %c0_3 = arith.constant 0 : index
    %3 = vector.load %arg2[%c3, %c0_3] : memref<9x512xf32, #tpu.memory_space<vmem>>, vector<1x512xf32>
    %c5 = arith.constant 5 : index
    %c0_4 = arith.constant 0 : index
    %4 = vector.load %arg2[%c5, %c0_4] : memref<9x512xf32, #tpu.memory_space<vmem>>, vector<1x512xf32>
    %c6 = arith.constant 6 : index
    %c0_5 = arith.constant 0 : index
    %5 = vector.load %arg2[%c6, %c0_5] : memref<9x512xf32, #tpu.memory_space<vmem>>, vector<1x512xf32>
    %c7 = arith.constant 7 : index
    %c0_6 = arith.constant 0 : index
    %6 = vector.load %arg2[%c7, %c0_6] : memref<9x512xf32, #tpu.memory_space<vmem>>, vector<1x512xf32>
    %c8 = arith.constant 8 : index
    %c0_7 = arith.constant 0 : index
    %7 = vector.load %arg2[%c8, %c0_7] : memref<9x512xf32, #tpu.memory_space<vmem>>, vector<1x512xf32>
    %c0_8 = arith.constant 0 : index
    %c0_9 = arith.constant 0 : index
    %8 = vector.load %arg1[%c0_8, %c0_9] : memref<8x512xf32, #tpu.memory_space<vmem>>, vector<8x512xf32>
    %c17_i32 = arith.constant 17 : i32
    %9 = tpu.dynamic_rotate %8 by %c17_i32 dim 1 : vector<8x512xf32>, i32 -> vector<8x512xf32>
    %10 = vector.broadcast %0 : vector<1x512xf32> to vector<8x512xf32>
    %11 = arith.mulf %9, %10 : vector<8x512xf32>
    %c0_10 = arith.constant 0 : index
    %c0_11 = arith.constant 0 : index
    %12 = vector.load %arg9[%c0_10, %c0_11] : memref<72x512xf32, #tpu.memory_space<vmem>>, vector<8x512xf32>
    tpu.vector_store %arg9[%c0_10, %c0_11], %11 {strides = array<i32>} : memref<72x512xf32, #tpu.memory_space<vmem>>, vector<8x512xf32>,
    %c16_i32 = arith.constant 16 : i32
    %13 = tpu.dynamic_rotate %8 by %c16_i32 dim 1 : vector<8x512xf32>, i32 -> vector<8x512xf32>
    %14 = vector.broadcast %1 : vector<1x512xf32> to vector<8x512xf32>
    %15 = arith.mulf %13, %14 : vector<8x512xf32>
    %c8_12 = arith.constant 8 : index
    %c0_13 = arith.constant 0 : index
    %16 = vector.load %arg9[%c8_12, %c0_13] : memref<72x512xf32, #tpu.memory_space<vmem>>, vector<8x512xf32>
    tpu.vector_store %arg9[%c8_12, %c0_13], %15 {strides = array<i32>} : memref<72x512xf32, #tpu.memory_space<vmem>>, vector<8x512xf32>,
    %c15_i32 = arith.constant 15 : i32
    %17 = tpu.dynamic_rotate %8 by %c15_i32 dim 1 : vector<8x512xf32>, i32 -> vector<8x512xf32>
    %18 = vector.broadcast %2 : vector<1x512xf32> to vector<8x512xf32>
    %19 = arith.mulf %17, %18 : vector<8x512xf32>
    %c16 = arith.constant 16 : index
    %c0_14 = arith.constant 0 : index
    %20 = vector.load %arg9[%c16, %c0_14] : memref<72x512xf32, #tpu.memory_space<vmem>>, vector<8x512xf32>
    tpu.vector_store %arg9[%c16, %c0_14], %19 {strides = array<i32>} : memref<72x512xf32, #tpu.memory_space<vmem>>, vector<8x512xf32>,
    %c1_i32 = arith.constant 1 : i32
    %21 = tpu.dynamic_rotate %8 by %c1_i32 dim 1 : vector<8x512xf32>, i32 -> vector<8x512xf32>
    %22 = vector.broadcast %3 : vector<1x512xf32> to vector<8x512xf32>
    %23 = arith.mulf %21, %22 : vector<8x512xf32>
    %c24 = arith.constant 24 : index
    %c0_15 = arith.constant 0 : index
    %24 = vector.load %arg9[%c24, %c0_15] : memref<72x512xf32, #tpu.memory_space<vmem>>, vector<8x512xf32>
    tpu.vector_store %arg9[%c24, %c0_15], %23 {strides = array<i32>} : memref<72x512xf32, #tpu.memory_space<vmem>>, vector<8x512xf32>,
    %c32 = arith.constant 32 : index
    %c0_16 = arith.constant 0 : index
    %25 = vector.load %arg9[%c32, %c0_16] : memref<72x512xf32, #tpu.memory_space<vmem>>, vector<8x512xf32>
    tpu.vector_store %arg9[%c32, %c0_16], %8 {strides = array<i32>} : memref<72x512xf32, #tpu.memory_space<vmem>>, vector<8x512xf32>,
    %c511_i32 = arith.constant 511 : i32
    %26 = tpu.dynamic_rotate %8 by %c511_i32 dim 1 : vector<8x512xf32>, i32 -> vector<8x512xf32>
    %27 = vector.broadcast %4 : vector<1x512xf32> to vector<8x512xf32>
    %28 = arith.mulf %26, %27 : vector<8x512xf32>
    %c40 = arith.constant 40 : index
    %c0_17 = arith.constant 0 : index
    %29 = vector.load %arg9[%c40, %c0_17] : memref<72x512xf32, #tpu.memory_space<vmem>>, vector<8x512xf32>
    tpu.vector_store %arg9[%c40, %c0_17], %28 {strides = array<i32>} : memref<72x512xf32, #tpu.memory_space<vmem>>, vector<8x512xf32>,
    %c497_i32 = arith.constant 497 : i32
    %30 = tpu.dynamic_rotate %8 by %c497_i32 dim 1 : vector<8x512xf32>, i32 -> vector<8x512xf32>
    %31 = vector.broadcast %5 : vector<1x512xf32> to vector<8x512xf32>
    %32 = arith.mulf %30, %31 : vector<8x512xf32>
    %c48 = arith.constant 48 : index
    %c0_18 = arith.constant 0 : index
    %33 = vector.load %arg9[%c48, %c0_18] : memref<72x512xf32, #tpu.memory_space<vmem>>, vector<8x512xf32>
    tpu.vector_store %arg9[%c48, %c0_18], %32 {strides = array<i32>} : memref<72x512xf32, #tpu.memory_space<vmem>>, vector<8x512xf32>,
    %c496_i32 = arith.constant 496 : i32
    %34 = tpu.dynamic_rotate %8 by %c496_i32 dim 1 : vector<8x512xf32>, i32 -> vector<8x512xf32>
    %35 = vector.broadcast %6 : vector<1x512xf32> to vector<8x512xf32>
    %36 = arith.mulf %34, %35 : vector<8x512xf32>
    %c56 = arith.constant 56 : index
    %c0_19 = arith.constant 0 : index
    %37 = vector.load %arg9[%c56, %c0_19] : memref<72x512xf32, #tpu.memory_space<vmem>>, vector<8x512xf32>
    tpu.vector_store %arg9[%c56, %c0_19], %36 {strides = array<i32>} : memref<72x512xf32, #tpu.memory_space<vmem>>, vector<8x512xf32>,
    %c495_i32 = arith.constant 495 : i32
    %38 = tpu.dynamic_rotate %8 by %c495_i32 dim 1 : vector<8x512xf32>, i32 -> vector<8x512xf32>
    %39 = vector.broadcast %7 : vector<1x512xf32> to vector<8x512xf32>
    %40 = arith.mulf %38, %39 : vector<8x512xf32>
    %c64 = arith.constant 64 : index
    %c0_20 = arith.constant 0 : index
    %41 = vector.load %arg9[%c64, %c0_20] : memref<72x512xf32, #tpu.memory_space<vmem>>, vector<8x512xf32>
    tpu.vector_store %arg9[%c64, %c0_20], %40 {strides = array<i32>} : memref<72x512xf32, #tpu.memory_space<vmem>>, vector<8x512xf32>,
    %c0_21 = arith.constant 0 : index
    %c0_22 = arith.constant 0 : index
    %42 = vector.load %arg9[%c0_21, %c0_22] : memref<72x512xf32, #tpu.memory_space<vmem>>, vector<72x512xf32>
    %43 = arith.truncf %42 : vector<72x512xf32> to vector<72x512xbf16>
    %c0_23 = arith.constant 0 : index
    %c0_24 = arith.constant 0 : index
    %44 = vector.load %arg3[%c0_23, %c0_24] : memref<8x72xbf16, #tpu.memory_space<vmem>>, vector<8x72xbf16>
    %cst = arith.constant dense<0.000000e+00> : vector<8x512xf32>
    %45 = tpu.matmul %44, %43, %cst {dimension_numbers = #tpu.dot_dimension_numbers<[1], [0], [0], [1], [0, 0, 1, 1], [], []>} : vector<8x72xbf16>, vector<72x512xbf16>, vector<8x512xf32> -> vector<8x512xf32>
    %c0_25 = arith.constant 0 : index
    %c0_26 = arith.constant 0 : index
    %46 = vector.load %arg6[%c0_25, %c0_26] : memref<8x1xf32, #tpu.memory_space<vmem>>, vector<8x1xf32>
    %47 = vector.broadcast %46 : vector<8x1xf32> to vector<8x512xf32>
    %48 = arith.addf %45, %47 : vector<8x512xf32>
    %cst_27 = arith.constant 0.000000e+00 : f32
    %49 = vector.broadcast %cst_27 : f32 to vector<8x512xf32>
    %50 = arith.maximumf %48, %49 : vector<8x512xf32>
    %c17_i32_28 = arith.constant 17 : i32
    %51 = tpu.dynamic_rotate %50 by %c17_i32_28 dim 1 : vector<8x512xf32>, i32 -> vector<8x512xf32>
    %52 = vector.broadcast %0 : vector<1x512xf32> to vector<8x512xf32>
    %53 = arith.mulf %51, %52 : vector<8x512xf32>
    %c0_29 = arith.constant 0 : index
    %c0_30 = arith.constant 0 : index
    %54 = vector.load %arg9[%c0_29, %c0_30] : memref<72x512xf32, #tpu.memory_space<vmem>>, vector<8x512xf32>
    tpu.vector_store %arg9[%c0_29, %c0_30], %53 {strides = array<i32>} : memref<72x512xf32, #tpu.memory_space<vmem>>, vector<8x512xf32>,
    %c16_i32_31 = arith.constant 16 : i32
    %55 = tpu.dynamic_rotate %50 by %c16_i32_31 dim 1 : vector<8x512xf32>, i32 -> vector<8x512xf32>
    %56 = vector.broadcast %1 : vector<1x512xf32> to vector<8x512xf32>
    %57 = arith.mulf %55, %56 : vector<8x512xf32>
    %c8_32 = arith.constant 8 : index
    %c0_33 = arith.constant 0 : index
    %58 = vector.load %arg9[%c8_32, %c0_33] : memref<72x512xf32, #tpu.memory_space<vmem>>, vector<8x512xf32>
    tpu.vector_store %arg9[%c8_32, %c0_33], %57 {strides = array<i32>} : memref<72x512xf32, #tpu.memory_space<vmem>>, vector<8x512xf32>,
    %c15_i32_34 = arith.constant 15 : i32
    %59 = tpu.dynamic_rotate %50 by %c15_i32_34 dim 1 : vector<8x512xf32>, i32 -> vector<8x512xf32>
    %60 = vector.broadcast %2 : vector<1x512xf32> to vector<8x512xf32>
    %61 = arith.mulf %59, %60 : vector<8x512xf32>
    %c16_35 = arith.constant 16 : index
    %c0_36 = arith.constant 0 : index
    %62 = vector.load %arg9[%c16_35, %c0_36] : memref<72x512xf32, #tpu.memory_space<vmem>>, vector<8x512xf32>
    tpu.vector_store %arg9[%c16_35, %c0_36], %61 {strides = array<i32>} : memref<72x512xf32, #tpu.memory_space<vmem>>, vector<8x512xf32>,
    %c1_i32_37 = arith.constant 1 : i32
    %63 = tpu.dynamic_rotate %50 by %c1_i32_37 dim 1 : vector<8x512xf32>, i32 -> vector<8x512xf32>
    %64 = vector.broadcast %3 : vector<1x512xf32> to vector<8x512xf32>
    %65 = arith.mulf %63, %64 : vector<8x512xf32>
    %c24_38 = arith.constant 24 : index
    %c0_39 = arith.constant 0 : index
    %66 = vector.load %arg9[%c24_38, %c0_39] : memref<72x512xf32, #tpu.memory_space<vmem>>, vector<8x512xf32>
    tpu.vector_store %arg9[%c24_38, %c0_39], %65 {strides = array<i32>} : memref<72x512xf32, #tpu.memory_space<vmem>>, vector<8x512xf32>,
    %c32_40 = arith.constant 32 : index
    %c0_41 = arith.constant 0 : index
    %67 = vector.load %arg9[%c32_40, %c0_41] : memref<72x512xf32, #tpu.memory_space<vmem>>, vector<8x512xf32>
    tpu.vector_store %arg9[%c32_40, %c0_41], %50 {strides = array<i32>} : memref<72x512xf32, #tpu.memory_space<vmem>>, vector<8x512xf32>,
    %c511_i32_42 = arith.constant 511 : i32
    %68 = tpu.dynamic_rotate %50 by %c511_i32_42 dim 1 : vector<8x512xf32>, i32 -> vector<8x512xf32>
    %69 = vector.broadcast %4 : vector<1x512xf32> to vector<8x512xf32>
    %70 = arith.mulf %68, %69 : vector<8x512xf32>
    %c40_43 = arith.constant 40 : index
    %c0_44 = arith.constant 0 : index
    %71 = vector.load %arg9[%c40_43, %c0_44] : memref<72x512xf32, #tpu.memory_space<vmem>>, vector<8x512xf32>
    tpu.vector_store %arg9[%c40_43, %c0_44], %70 {strides = array<i32>} : memref<72x512xf32, #tpu.memory_space<vmem>>, vector<8x512xf32>,
    %c497_i32_45 = arith.constant 497 : i32
    %72 = tpu.dynamic_rotate %50 by %c497_i32_45 dim 1 : vector<8x512xf32>, i32 -> vector<8x512xf32>
    %73 = vector.broadcast %5 : vector<1x512xf32> to vector<8x512xf32>
    %74 = arith.mulf %72, %73 : vector<8x512xf32>
    %c48_46 = arith.constant 48 : index
    %c0_47 = arith.constant 0 : index
    %75 = vector.load %arg9[%c48_46, %c0_47] : memref<72x512xf32, #tpu.memory_space<vmem>>, vector<8x512xf32>
    tpu.vector_store %arg9[%c48_46, %c0_47], %74 {strides = array<i32>} : memref<72x512xf32, #tpu.memory_space<vmem>>, vector<8x512xf32>,
    %c496_i32_48 = arith.constant 496 : i32
    %76 = tpu.dynamic_rotate %50 by %c496_i32_48 dim 1 : vector<8x512xf32>, i32 -> vector<8x512xf32>
    %77 = vector.broadcast %6 : vector<1x512xf32> to vector<8x512xf32>
    %78 = arith.mulf %76, %77 : vector<8x512xf32>
    %c56_49 = arith.constant 56 : index
    %c0_50 = arith.constant 0 : index
    %79 = vector.load %arg9[%c56_49, %c0_50] : memref<72x512xf32, #tpu.memory_space<vmem>>, vector<8x512xf32>
    tpu.vector_store %arg9[%c56_49, %c0_50], %78 {strides = array<i32>} : memref<72x512xf32, #tpu.memory_space<vmem>>, vector<8x512xf32>,
    %c495_i32_51 = arith.constant 495 : i32
    %80 = tpu.dynamic_rotate %50 by %c495_i32_51 dim 1 : vector<8x512xf32>, i32 -> vector<8x512xf32>
    %81 = vector.broadcast %7 : vector<1x512xf32> to vector<8x512xf32>
    %82 = arith.mulf %80, %81 : vector<8x512xf32>
    %c64_52 = arith.constant 64 : index
    %c0_53 = arith.constant 0 : index
    %83 = vector.load %arg9[%c64_52, %c0_53] : memref<72x512xf32, #tpu.memory_space<vmem>>, vector<8x512xf32>
    tpu.vector_store %arg9[%c64_52, %c0_53], %82 {strides = array<i32>} : memref<72x512xf32, #tpu.memory_space<vmem>>, vector<8x512xf32>,
    %c0_54 = arith.constant 0 : index
    %c0_55 = arith.constant 0 : index
    %84 = vector.load %arg9[%c0_54, %c0_55] : memref<72x512xf32, #tpu.memory_space<vmem>>, vector<72x512xf32>
    %85 = arith.truncf %84 : vector<72x512xf32> to vector<72x512xbf16>
    %c0_56 = arith.constant 0 : index
    %c0_57 = arith.constant 0 : index
    %86 = vector.load %arg4[%c0_56, %c0_57] : memref<8x72xbf16, #tpu.memory_space<vmem>>, vector<8x72xbf16>
    %cst_58 = arith.constant dense<0.000000e+00> : vector<8x512xf32>
    %87 = tpu.matmul %86, %85, %cst_58 {dimension_numbers = #tpu.dot_dimension_numbers<[1], [0], [0], [1], [0, 0, 1, 1], [], []>} : vector<8x72xbf16>, vector<72x512xbf16>, vector<8x512xf32> -> vector<8x512xf32>
    %c0_59 = arith.constant 0 : index
    %c0_60 = arith.constant 0 : index
    %88 = vector.load %arg5[%c0_59, %c0_60] : memref<8x8xbf16, #tpu.memory_space<vmem>>, vector<8x8xbf16>
    %89 = arith.truncf %8 : vector<8x512xf32> to vector<8x512xbf16>
    %cst_61 = arith.constant dense<0.000000e+00> : vector<8x512xf32>
    %90 = tpu.matmul %88, %89, %cst_61 {dimension_numbers = #tpu.dot_dimension_numbers<[1], [0], [0], [1], [0, 0, 1, 1], [], []>} : vector<8x8xbf16>, vector<8x512xbf16>, vector<8x512xf32> -> vector<8x512xf32>
    %91 = arith.addf %87, %90 : vector<8x512xf32>
    %c0_62 = arith.constant 0 : index
    %c0_63 = arith.constant 0 : index
    %92 = vector.load %arg7[%c0_62, %c0_63] : memref<8x1xf32, #tpu.memory_space<vmem>>, vector<8x1xf32>
    %93 = vector.broadcast %92 : vector<8x1xf32> to vector<8x512xf32>
    %94 = arith.addf %91, %93 : vector<8x512xf32>
    %c0_64 = arith.constant 0 : index
    %c0_65 = arith.constant 0 : index
    %95 = vector.load %arg8[%c0_64, %c0_65] : memref<8x512xf32, #tpu.memory_space<vmem>>, vector<8x512xf32>
    tpu.vector_store %arg8[%c0_64, %c0_65], %94 {strides = array<i32>} : memref<8x512xf32, #tpu.memory_space<vmem>>, vector<8x512xf32>,
    return
  }
  func.func @transform_0(%arg0: i32) -> (i32, i32) {
    %c0_i32 = arith.constant 0 : i32
    %c0_i32_0 = arith.constant 0 : i32
    return %c0_i32, %arg0 : i32, i32
  }
  func.func @transform_1(%arg0: i32) -> (i32, i32) {
    %c0_i32 = arith.constant 0 : i32
    %c0_i32_0 = arith.constant 0 : i32
    %c0_i32_1 = arith.constant 0 : i32
    return %c0_i32, %c0_i32_0 : i32, i32
  }
  func.func @transform_2(%arg0: i32) -> (i32, i32) {
    %c0_i32 = arith.constant 0 : i32
    %c0_i32_0 = arith.constant 0 : i32
    %c0_i32_1 = arith.constant 0 : i32
    return %c0_i32, %c0_i32_0 : i32, i32
  }
  func.func @transform_3(%arg0: i32) -> (i32, i32) {
    %c0_i32 = arith.constant 0 : i32
    %c0_i32_0 = arith.constant 0 : i32
    %c0_i32_1 = arith.constant 0 : i32
    return %c0_i32, %c0_i32_0 : i32, i32
  }
  func.func @transform_4(%arg0: i32) -> (i32, i32) {
    %c0_i32 = arith.constant 0 : i32
    %c0_i32_0 = arith.constant 0 : i32
    %c0_i32_1 = arith.constant 0 : i32
    return %c0_i32, %c0_i32_0 : i32, i32
  }
  func.func @transform_5(%arg0: i32) -> (i32, i32) {
    %c0_i32 = arith.constant 0 : i32
    %c0_i32_0 = arith.constant 0 : i32
    %c0_i32_1 = arith.constant 0 : i32
    return %c0_i32, %c0_i32_0 : i32, i32
  }
  func.func @transform_6(%arg0: i32) -> (i32, i32) {
    %c0_i32 = arith.constant 0 : i32
    %c0_i32_0 = arith.constant 0 : i32
    %c0_i32_1 = arith.constant 0 : i32
    return %c0_i32, %c0_i32_0 : i32, i32
  }
  func.func @transform_7(%arg0: i32) -> (i32, i32) {
    %c0_i32 = arith.constant 0 : i32
    %c0_i32_0 = arith.constant 0 : i32
    return %c0_i32, %arg0 : i32, i32
  }
}

</mosaic_0001>

<llo_original>
// kernel: tpu_custom_call.1
$region0: #{tpu_custom_call.1}
  #allocation0 [shape = 'u32[]', space=smem, size = 0x4, offset = 0x4, fixed_abs, tag = 'smem constant byte address 0x4 - core index']
  #allocation1 [shape = 'u32[144,128]{1,0:T(1,128)}', space=vmem, size = 0x12000, scoped, tag = 'internal scratch']
  #allocation2 [shape = 'f32[72,512]{1,0:T(8,128)}', space=vmem, size = 0x24000, scoped, tag = 'scratch operand']
  %s0 = inlined_call_operand.hbm [shape: f32[8,512], index: 0, kind: input, shape index: {}]
  %s1 = inlined_call_operand.hbm [shape: f32[9,512], index: 1, kind: input, shape index: {}]
  %s2 = inlined_call_operand.vmem [shape: bf16[8,72], index: 2, kind: input, shape index: {}]
  %s3 = inlined_call_operand.vmem [shape: bf16[8,72], index: 3, kind: input, shape index: {}]
  %s4 = inlined_call_operand.vmem [shape: bf16[8,8], index: 4, kind: input, shape index: {}]
  %s5 = inlined_call_operand.vmem [shape: f32[8,1], index: 5, kind: input, shape index: {}]
  %s6 = inlined_call_operand.vmem [shape: f32[8,1], index: 6, kind: input, shape index: {}]
  %s7 = inlined_call_operand.hbm [shape: f32[8,512], index: 7, kind: output, shape index: {}]
  %s8 = sld [smem:[#allocation0]]
  $region46: #{tpu_custom_call.1} parent=0
    _
  %s10 = ssub.s32 1, %s8
  %s11 = scalar_select 0, %s10, %s8
  $region1: #{tpu_custom_call.1} parent=0
    #allocation3 [shape = 'u8[16384]{0}', space=vmem, size = 0x4000, scoped, tag = 'input window, operand 0, single buffered']
    #allocation4 [shape = 's32[1]{0}', space=sflag, size = 0x4, scoped, tag = 'scoped memory for tpu_custom_call.1']
    #allocation5 [shape = 's32[1]{0}', space=sflag, size = 0x4, scoped, tag = 'scoped memory for tpu_custom_call.1']
    #allocation6 [shape = 'u8[32768]{0}', space=vmem, size = 0x8000, scoped, tag = 'input window, operand 1, single buffered']
    #allocation7 [shape = 's32[1]{0}', space=sflag, size = 0x4, scoped, tag = 'scoped memory for tpu_custom_call.1']
    #allocation8 [shape = 'u8[16384]{0}', space=vmem, size = 0x4000, scoped, tag = 'output window, operand 0, single buffered']
    %12 = vsyncpa [#allocation4], 0
    %13 = vsyncpa [#allocation7], 0
    %14 = vsyncpa [#allocation5], 0
    // Predicated region
    $region2: #{tpu_custom_call.1} parent=1 // pred_check
      _
    $region3: #{tpu_custom_call.1} parent=1 // pred_check_branch
      %16 = sbr.rel (0) target = $region5
    $region4: #{tpu_custom_call.1} parent=1 // pred_region
      %s18 = ssub.s32 512, 512
      %19 = vsyncadd [#allocation4], %s18
      %s21 = sshll.u32 [#allocation3], 4
      %s22 = int_to_ptr.vmem [resolvable:$true] %s21
      %24 = dma.hbm_to_vmem [thread:$0]  %s0, 512, %s22, [#allocation4]
    $region5: #{tpu_custom_call.1} parent=1 // pred_fallthru
      _
    // Predicated region
    $region6: #{tpu_custom_call.1} parent=1 // pred_check
      _
    $region7: #{tpu_custom_call.1} parent=1 // pred_check_branch
      %26 = sbr.rel (0) target = $region9
    $region8: #{tpu_custom_call.1} parent=1 // pred_region
      %s28 = ssub.s32 1024, 1024
      %29 = vsyncadd [#allocation7], %s28
      %s30 = sshll.u32 [#allocation6], 4
      %s31 = int_to_ptr.vmem [resolvable:$true] %s30
      %36 = dma.hbm_to_vmem [thread:$0]  %s1, 1024, %s31, [#allocation7], 512, 512, 32
    $region9: #{tpu_custom_call.1} parent=1 // pred_fallthru
      _
    // Predicated region
    $region10: #{tpu_custom_call.1} parent=1 // pred_check
      _
    $region11: #{tpu_custom_call.1} parent=1 // pred_check_branch
      %38 = sbr.rel (0) target = $region13
    $region12: #{tpu_custom_call.1} parent=1 // pred_region
      _
    $region13: #{tpu_custom_call.1} parent=1 // pred_fallthru
      _
    // Predicated region
    $region14: #{tpu_custom_call.1} parent=1 // pred_check
      _
    $region15: #{tpu_custom_call.1} parent=1 // pred_check_branch
      %40 = sbr.rel (0) target = $region17
    $region16: #{tpu_custom_call.1} parent=1 // pred_region
      _
    $region17: #{tpu_custom_call.1} parent=1 // pred_fallthru
      _
    // Predicated region
    $region18: #{tpu_custom_call.1} parent=1 // pred_check
      _
    $region19: #{tpu_custom_call.1} parent=1 // pred_check_branch
      %42 = sbr.rel (0) target = $region21
    $region20: #{tpu_custom_call.1} parent=1 // pred_region
      _
    $region21: #{tpu_custom_call.1} parent=1 // pred_fallthru
      _
    // Predicated region
    $region22: #{tpu_custom_call.1} parent=1 // pred_check
      _
    $region23: #{tpu_custom_call.1} parent=1 // pred_check_branch
      %44 = sbr.rel (0) target = $region25
    $region24: #{tpu_custom_call.1} parent=1 // pred_region
      _
    $region25: #{tpu_custom_call.1} parent=1 // pred_fallthru
      _
    // Predicated region
    $region26: #{tpu_custom_call.1} parent=1 // pred_check
      _
    $region27: #{tpu_custom_call.1} parent=1 // pred_check_branch
      %46 = sbr.rel (0) target = $region29
    $region28: #{tpu_custom_call.1} parent=1 // pred_region
      _
    $region29: #{tpu_custom_call.1} parent=1 // pred_fallthru
      _
    // Predicated region
    $region30: #{tpu_custom_call.1} parent=1 // pred_check
      _
    $region31: #{tpu_custom_call.1} parent=1 // pred_check_branch
      %48 = sbr.rel (0) target = $region33
    $region32: #{tpu_custom_call.1} parent=1 // pred_region
      %49 = dma.done [#allocation4], 512
    $region33: #{tpu_custom_call.1} parent=1 // pred_fallthru
      _
    // Predicated region
    $region34: #{tpu_custom_call.1} parent=1 // pred_check
      _
    $region35: #{tpu_custom_call.1} parent=1 // pred_check_branch
      %51 = sbr.rel (0) target = $region37
    $region36: #{tpu_custom_call.1} parent=1 // pred_region
      %52 = dma.done [#allocation7], 1024
    $region37: #{tpu_custom_call.1} parent=1 // pred_fallthru
      _
    %v54 = vld [vmem:[#allocation6] ss:$8 sm:$0xf]
    %s55 = scalar_lea.vmem [#allocation6], 1
    %v56 = vld [vmem:[%s55] ss:$8 sm:$0xf]
    %s57 = scalar_lea.vmem [#allocation6], 2
    %v58 = vld [vmem:[%s57] ss:$8 sm:$0xf]
    %s59 = scalar_lea.vmem [#allocation6], 3
    %v60 = vld [vmem:[%s59] ss:$8 sm:$0xf]
    %s61 = scalar_lea.vmem [#allocation6], 5
    %v62 = vld [vmem:[%s61] ss:$8 sm:$0xf]
    %s63 = scalar_lea.vmem [#allocation6], 6
    %v64 = vld [vmem:[%s63] ss:$8 sm:$0xf]
    %s65 = scalar_lea.vmem [#allocation6], 7
    %v66 = vld [vmem:[%s65] ss:$8 sm:$0xf]
    %s67 = scalar_lea.vmem [#allocation6], 32
    %v68 = vld [vmem:[%s67] ss:$8 sm:$0xf]
    %v69 = vld [vmem:[#allocation3] sm:$0xff]
    %v70 = vld [vmem:[#allocation3 + $0x8] sm:$0xff]
    %v71 = vld [vmem:[#allocation3 + $0x10] sm:$0xff]
    %v72 = vld [vmem:[#allocation3 + $0x18] sm:$0xff]
    %73 = vrot.lane.b32.xlu0 %v69, 17
    %v74 = vpop.permute.xlu0 %73
    %75 = vrot.lane.b32.xlu0 %v70, 17
    %v76 = vpop.permute.xlu0 %75
    %77 = vrot.lane.b32.xlu0 %v71, 17
    %v78 = vpop.permute.xlu0 %77
    %79 = vrot.lane.b32.xlu0 %v72, 17
    %v80 = vpop.permute.xlu0 %79
    %v81 = vlaneseq
    %v82 = vand.u32 %v81, 127
    %vm83 = vcmp.lt.s32.totalorder %v82, 17
    %v84 = vsel %vm83, %v78, %v80
    %v85 = vsel %vm83, %v76, %v78
    %v86 = vsel %vm83, %v74, %v76
    %v87 = vsel %vm83, %v80, %v74
    %v89 = vlaneseq
    %v90 = vshrl.u32 %v89, 7
    %v91 = vsub.s32 0, %v90
    %v92 = vrot.slane %v54, %v91
    %v93 = vlaneseq
    %v94 = vshrl.u32 %v93, 7
    %v95 = vsub.s32 1, %v94
    %v96 = vrot.slane %v54, %v95
    %v97 = vlaneseq
    %v98 = vshrl.u32 %v97, 7
    %v99 = vsub.s32 2, %v98
    %v100 = vrot.slane %v54, %v99
    %v101 = vlaneseq
    %v102 = vshrl.u32 %v101, 7
    %v103 = vsub.s32 3, %v102
    %v104 = vrot.slane %v54, %v103
    %v109 = vmul.f32 %v87, %v92
    %v110 = vmul.f32 %v86, %v96
    %v111 = vmul.f32 %v85, %v100
    %v112 = vmul.f32 %v84, %v104
    %113 = vst [vmem:[#allocation2] sm:$0xff] %v109
    %114 = vst [vmem:[#allocation2 + $0x8] sm:$0xff] %v110
    %115 = vst [vmem:[#allocation2 + $0x10] sm:$0xff] %v111
    %116 = vst [vmem:[#allocation2 + $0x18] sm:$0xff] %v112
    %117 = vrot.lane.b32.xlu0 %v69, 16
    %v118 = vpop.permute.xlu0 %117
    %119 = vrot.lane.b32.xlu0 %v70, 16
    %v120 = vpop.permute.xlu0 %119
    %121 = vrot.lane.b32.xlu0 %v71, 16
    %v122 = vpop.permute.xlu0 %121
    %123 = vrot.lane.b32.xlu0 %v72, 16
    %v124 = vpop.permute.xlu0 %123
    %vm125 = vcmp.lt.s32.totalorder %v82, 16
    %v126 = vsel %vm125, %v122, %v124
    %v127 = vsel %vm125, %v120, %v122
    %v128 = vsel %vm125, %v118, %v120
    %v129 = vsel %vm125, %v124, %v118
    %v131 = vlaneseq
    %v132 = vshrl.u32 %v131, 7
    %v133 = vsub.s32 0, %v132
    %v134 = vrot.slane %v56, %v133
    %v135 = vlaneseq
    %v136 = vshrl.u32 %v135, 7
    %v137 = vsub.s32 1, %v136
    %v138 = vrot.slane %v56, %v137
    %v139 = vlaneseq
    %v140 = vshrl.u32 %v139, 7
    %v141 = vsub.s32 2, %v140
    %v142 = vrot.slane %v56, %v141
    %v143 = vlaneseq
    %v144 = vshrl.u32 %v143, 7
    %v145 = vsub.s32 3, %v144
    %v146 = vrot.slane %v56, %v145
    %v151 = vmul.f32 %v129, %v134
    %v152 = vmul.f32 %v128, %v138
    %v153 = vmul.f32 %v127, %v142
    %v154 = vmul.f32 %v126, %v146
    %155 = vst [vmem:[#allocation2 + $0x20] sm:$0xff] %v151
    %156 = vst [vmem:[#allocation2 + $0x28] sm:$0xff] %v152
    %157 = vst [vmem:[#allocation2 + $0x30] sm:$0xff] %v153
    %158 = vst [vmem:[#allocation2 + $0x38] sm:$0xff] %v154
    %159 = vrot.lane.b32.xlu0 %v69, 15
    %v160 = vpop.permute.xlu0 %159
    %161 = vrot.lane.b32.xlu0 %v70, 15
    %v162 = vpop.permute.xlu0 %161
    %163 = vrot.lane.b32.xlu0 %v71, 15
    %v164 = vpop.permute.xlu0 %163
    %165 = vrot.lane.b32.xlu0 %v72, 15
    %v166 = vpop.permute.xlu0 %165
    %vm167 = vcmp.lt.s32.totalorder %v82, 15
    %v168 = vsel %vm167, %v164, %v166
    %v169 = vsel %vm167, %v162, %v164
    %v170 = vsel %vm167, %v160, %v162
    %v171 = vsel %vm167, %v166, %v160
    %v173 = vlaneseq
    %v174 = vshrl.u32 %v173, 7
    %v175 = vsub.s32 0, %v174
    %v176 = vrot.slane %v58, %v175
    %v177 = vlaneseq
    %v178 = vshrl.u32 %v177, 7
    %v179 = vsub.s32 1, %v178
    %v180 = vrot.slane %v58, %v179
    %v181 = vlaneseq
    %v182 = vshrl.u32 %v181, 7
    %v183 = vsub.s32 2, %v182
    %v184 = vrot.slane %v58, %v183
    %v185 = vlaneseq
    %v186 = vshrl.u32 %v185, 7
    %v187 = vsub.s32 3, %v186
    %v188 = vrot.slane %v58, %v187
    %v193 = vmul.f32 %v171, %v176
    %v194 = vmul.f32 %v170, %v180
    %v195 = vmul.f32 %v169, %v184
    %v196 = vmul.f32 %v168, %v188
    %197 = vst [vmem:[#allocation2 + $0x40] sm:$0xff] %v193
    %198 = vst [vmem:[#allocation2 + $0x48] sm:$0xff] %v194
    %199 = vst [vmem:[#allocation2 + $0x50] sm:$0xff] %v195
    %200 = vst [vmem:[#allocation2 + $0x58] sm:$0xff] %v196
    %201 = vrot.lane.b32.xlu0 %v69, 1
    %v202 = vpop.permute.xlu0 %201
    %203 = vrot.lane.b32.xlu0 %v70, 1
    %v204 = vpop.permute.xlu0 %203
    %205 = vrot.lane.b32.xlu0 %v71, 1
    %v206 = vpop.permute.xlu0 %205
    %207 = vrot.lane.b32.xlu0 %v72, 1
    %v208 = vpop.permute.xlu0 %207
    %vm209 = vcmp.lt.s32.totalorder %v82, 1
    %v210 = vsel %vm209, %v206, %v208
    %v211 = vsel %vm209, %v204, %v206
    %v212 = vsel %vm209, %v202, %v204
    %v213 = vsel %vm209, %v208, %v202
    %v215 = vlaneseq
    %v216 = vshrl.u32 %v215, 7
    %v217 = vsub.s32 0, %v216
    %v218 = vrot.slane %v60, %v217
    %v219 = vlaneseq
    %v220 = vshrl.u32 %v219, 7
    %v221 = vsub.s32 1, %v220
    %v222 = vrot.slane %v60, %v221
    %v223 = vlaneseq
    %v224 = vshrl.u32 %v223, 7
    %v225 = vsub.s32 2, %v224
    %v226 = vrot.slane %v60, %v225
    %v227 = vlaneseq
    %v228 = vshrl.u32 %v227, 7
    %v229 = vsub.s32 3, %v228
    %v230 = vrot.slane %v60, %v229
    %v235 = vmul.f32 %v213, %v218
    %v236 = vmul.f32 %v212, %v222
    %v237 = vmul.f32 %v211, %v226
    %v238 = vmul.f32 %v210, %v230
    %239 = vst [vmem:[#allocation2 + $0x60] sm:$0xff] %v235
    %240 = vst [vmem:[#allocation2 + $0x68] sm:$0xff] %v236
    %241 = vst [vmem:[#allocation2 + $0x70] sm:$0xff] %v237
    %242 = vst [vmem:[#allocation2 + $0x78] sm:$0xff] %v238
    %243 = vst [vmem:[#allocation2 + $0x80] sm:$0xff] %v69
    %244 = vst [vmem:[#allocation2 + $0x88] sm:$0xff] %v70
    %245 = vst [vmem:[#allocation2 + $0x90] sm:$0xff] %v71
    %246 = vst [vmem:[#allocation2 + $0x98] sm:$0xff] %v72
    %247 = vrot.lane.b32.xlu0 %v69, 127
    %v248 = vpop.permute.xlu0 %247
    %249 = vrot.lane.b32.xlu0 %v70, 127
    %v250 = vpop.permute.xlu0 %249
    %251 = vrot.lane.b32.xlu0 %v71, 127
    %v252 = vpop.permute.xlu0 %251
    %253 = vrot.lane.b32.xlu0 %v72, 127
    %v254 = vpop.permute.xlu0 %253
    %vm255 = vcmp.lt.s32.totalorder %v82, 127
    %v256 = vsel %vm255, %v252, %v254
    %v257 = vsel %vm255, %v250, %v252
    %v258 = vsel %vm255, %v248, %v250
    %v259 = vsel %vm255, %v254, %v248
    %v261 = vlaneseq
    %v262 = vshrl.u32 %v261, 7
    %v263 = vsub.s32 0, %v262
    %v264 = vrot.slane %v62, %v263
    %v265 = vlaneseq
    %v266 = vshrl.u32 %v265, 7
    %v267 = vsub.s32 1, %v266
    %v268 = vrot.slane %v62, %v267
    %v269 = vlaneseq
    %v270 = vshrl.u32 %v269, 7
    %v271 = vsub.s32 2, %v270
    %v272 = vrot.slane %v62, %v271
    %v273 = vlaneseq
    %v274 = vshrl.u32 %v273, 7
    %v275 = vsub.s32 3, %v274
    %v276 = vrot.slane %v62, %v275
    %v281 = vmul.f32 %v258, %v264
    %v282 = vmul.f32 %v257, %v268
    %v283 = vmul.f32 %v256, %v272
    %v284 = vmul.f32 %v259, %v276
    %285 = vst [vmem:[#allocation2 + $0xa0] sm:$0xff] %v281
    %286 = vst [vmem:[#allocation2 + $0xa8] sm:$0xff] %v282
    %287 = vst [vmem:[#allocation2 + $0xb0] sm:$0xff] %v283
    %288 = vst [vmem:[#allocation2 + $0xb8] sm:$0xff] %v284
    %289 = vrot.lane.b32.xlu0 %v69, 113
    %v290 = vpop.permute.xlu0 %289
    %291 = vrot.lane.b32.xlu0 %v70, 113
    %v292 = vpop.permute.xlu0 %291
    %293 = vrot.lane.b32.xlu0 %v71, 113
    %v294 = vpop.permute.xlu0 %293
    %295 = vrot.lane.b32.xlu0 %v72, 113
    %v296 = vpop.permute.xlu0 %295
    %vm297 = vcmp.lt.s32.totalorder %v82, 113
    %v298 = vsel %vm297, %v294, %v296
    %v299 = vsel %vm297, %v292, %v294
    %v300 = vsel %vm297, %v290, %v292
    %v301 = vsel %vm297, %v296, %v290
    %v303 = vlaneseq
    %v304 = vshrl.u32 %v303, 7
    %v305 = vsub.s32 0, %v304
    %v306 = vrot.slane %v64, %v305
    %v307 = vlaneseq
    %v308 = vshrl.u32 %v307, 7
    %v309 = vsub.s32 1, %v308
    %v310 = vrot.slane %v64, %v309
    %v311 = vlaneseq
    %v312 = vshrl.u32 %v311, 7
    %v313 = vsub.s32 2, %v312
    %v314 = vrot.slane %v64, %v313
    %v315 = vlaneseq
    %v316 = vshrl.u32 %v315, 7
    %v317 = vsub.s32 3, %v316
    %v318 = vrot.slane %v64, %v317
    %v323 = vmul.f32 %v300, %v306
    %v324 = vmul.f32 %v299, %v310
    %v325 = vmul.f32 %v298, %v314
    %v326 = vmul.f32 %v301, %v318
    %327 = vst [vmem:[#allocation2 + $0xc0] sm:$0xff] %v323
    %328 = vst [vmem:[#allocation2 + $0xc8] sm:$0xff] %v324
    %329 = vst [vmem:[#allocation2 + $0xd0] sm:$0xff] %v325
    %330 = vst [vmem:[#allocation2 + $0xd8] sm:$0xff] %v326
    %331 = vrot.lane.b32.xlu0 %v69, 112
    %v332 = vpop.permute.xlu0 %331
    %333 = vrot.lane.b32.xlu0 %v70, 112
    %v334 = vpop.permute.xlu0 %333
    %335 = vrot.lane.b32.xlu0 %v71, 112
    %v336 = vpop.permute.xlu0 %335
    %337 = vrot.lane.b32.xlu0 %v72, 112
    %v338 = vpop.permute.xlu0 %337
    %vm339 = vcmp.lt.s32.totalorder %v82, 112
    %v340 = vsel %vm339, %v336, %v338
    %v341 = vsel %vm339, %v334, %v336
    %v342 = vsel %vm339, %v332, %v334
    %v343 = vsel %vm339, %v338, %v332
    %v345 = vlaneseq
    %v346 = vshrl.u32 %v345, 7
    %v347 = vsub.s32 0, %v346
    %v348 = vrot.slane %v66, %v347
    %v349 = vlaneseq
    %v350 = vshrl.u32 %v349, 7
    %v351 = vsub.s32 1, %v350
    %v352 = vrot.slane %v66, %v351
    %v353 = vlaneseq
    %v354 = vshrl.u32 %v353, 7
    %v355 = vsub.s32 2, %v354
    %v356 = vrot.slane %v66, %v355
    %v357 = vlaneseq
    %v358 = vshrl.u32 %v357, 7
    %v359 = vsub.s32 3, %v358
    %v360 = vrot.slane %v66, %v359
    %v365 = vmul.f32 %v342, %v348
    %v366 = vmul.f32 %v341, %v352
    %v367 = vmul.f32 %v340, %v356
    %v368 = vmul.f32 %v343, %v360
    %369 = vst [vmem:[#allocation2 + $0xe0] sm:$0xff] %v365
    %370 = vst [vmem:[#allocation2 + $0xe8] sm:$0xff] %v366
    %371 = vst [vmem:[#allocation2 + $0xf0] sm:$0xff] %v367
    %372 = vst [vmem:[#allocation2 + $0xf8] sm:$0xff] %v368
    %373 = vrot.lane.b32.xlu0 %v69, 111
    %v374 = vpop.permute.xlu0 %373
    %375 = vrot.lane.b32.xlu0 %v70, 111
    %v376 = vpop.permute.xlu0 %375
    %377 = vrot.lane.b32.xlu0 %v71, 111
    %v378 = vpop.permute.xlu0 %377
    %379 = vrot.lane.b32.xlu0 %v72, 111
    %v380 = vpop.permute.xlu0 %379
    %vm381 = vcmp.lt.s32.totalorder %v82, 111
    %v382 = vsel %vm381, %v378, %v380
    %v383 = vsel %vm381, %v376, %v378
    %v384 = vsel %vm381, %v374, %v376
    %v385 = vsel %vm381, %v380, %v374
    %v387 = vlaneseq
    %v388 = vshrl.u32 %v387, 7
    %v389 = vsub.s32 0, %v388
    %v390 = vrot.slane %v68, %v389
    %v391 = vlaneseq
    %v392 = vshrl.u32 %v391, 7
    %v393 = vsub.s32 1, %v392
    %v394 = vrot.slane %v68, %v393
    %v395 = vlaneseq
    %v396 = vshrl.u32 %v395, 7
    %v397 = vsub.s32 2, %v396
    %v398 = vrot.slane %v68, %v397
    %v399 = vlaneseq
    %v400 = vshrl.u32 %v399, 7
    %v401 = vsub.s32 3, %v400
    %v402 = vrot.slane %v68, %v401
    %v407 = vmul.f32 %v384, %v390
    %v408 = vmul.f32 %v383, %v394
    %v409 = vmul.f32 %v382, %v398
    %v410 = vmul.f32 %v385, %v402
    %411 = vst [vmem:[#allocation2 + $0x100] sm:$0xff] %v407
    %412 = vst [vmem:[#allocation2 + $0x108] sm:$0xff] %v408
    %413 = vst [vmem:[#allocation2 + $0x110] sm:$0xff] %v409
    %414 = vst [vmem:[#allocation2 + $0x118] sm:$0xff] %v410
    %v415 = vld [vmem:[#allocation2] sm:$0xff]
    %v416 = vld [vmem:[#allocation2 + $0x8] sm:$0xff]
    %v417 = vld [vmem:[#allocation2 + $0x10] sm:$0xff]
    %v418 = vld [vmem:[#allocation2 + $0x18] sm:$0xff]
    %v419 = vld [vmem:[#allocation2 + $0x20] sm:$0xff]
    %v420 = vld [vmem:[#allocation2 + $0x28] sm:$0xff]
    %v421 = vld [vmem:[#allocation2 + $0x30] sm:$0xff]
    %v422 = vld [vmem:[#allocation2 + $0x38] sm:$0xff]
    %v423 = vld [vmem:[#allocation2 + $0x40] sm:$0xff]
    %v424 = vld [vmem:[#allocation2 + $0x48] sm:$0xff]
    %v425 = vld [vmem:[#allocation2 + $0x50] sm:$0xff]
    %v426 = vld [vmem:[#allocation2 + $0x58] sm:$0xff]
    %v427 = vld [vmem:[#allocation2 + $0x60] sm:$0xff]
    %v428 = vld [vmem:[#allocation2 + $0x68] sm:$0xff]
    %v429 = vld [vmem:[#allocation2 + $0x70] sm:$0xff]
    %v430 = vld [vmem:[#allocation2 + $0x78] sm:$0xff]
    %v431 = vld [vmem:[#allocation2 + $0x80] sm:$0xff]
    %v432 = vld [vmem:[#allocation2 + $0x88] sm:$0xff]
    %v433 = vld [vmem:[#allocation2 + $0x90] sm:$0xff]
    %v434 = vld [vmem:[#allocation2 + $0x98] sm:$0xff]
    %v435 = vld [vmem:[#allocation2 + $0xa0] sm:$0xff]
    %v436 = vld [vmem:[#allocation2 + $0xa8] sm:$0xff]
    %v437 = vld [vmem:[#allocation2 + $0xb0] sm:$0xff]
    %v438 = vld [vmem:[#allocation2 + $0xb8] sm:$0xff]
    %v439 = vld [vmem:[#allocation2 + $0xc0] sm:$0xff]
    %v440 = vld [vmem:[#allocation2 + $0xc8] sm:$0xff]
    %v441 = vld [vmem:[#allocation2 + $0xd0] sm:$0xff]
    %v442 = vld [vmem:[#allocation2 + $0xd8] sm:$0xff]
    %v443 = vld [vmem:[#allocation2 + $0xe0] sm:$0xff]
    %v444 = vld [vmem:[#allocation2 + $0xe8] sm:$0xff]
    %v445 = vld [vmem:[#allocation2 + $0xf0] sm:$0xff]
    %v446 = vld [vmem:[#allocation2 + $0xf8] sm:$0xff]
    %v447 = vld [vmem:[#allocation2 + $0x100] sm:$0xff]
    %v448 = vld [vmem:[#allocation2 + $0x108] sm:$0xff]
    %v449 = vld [vmem:[#allocation2 + $0x110] sm:$0xff]
    %v450 = vld [vmem:[#allocation2 + $0x118] sm:$0xff]
    %v451 = vpack.c.bf16 %v419, %v415
    %v452 = vpack.c.bf16 %v420, %v416
    %v453 = vpack.c.bf16 %v421, %v417
    %v454 = vpack.c.bf16 %v422, %v418
    %v455 = vpack.c.bf16 %v427, %v423
    %v456 = vpack.c.bf16 %v428, %v424
    %v457 = vpack.c.bf16 %v429, %v425
    %v458 = vpack.c.bf16 %v430, %v426
    %v459 = vpack.c.bf16 %v435, %v431
    %v460 = vpack.c.bf16 %v436, %v432
    %v461 = vpack.c.bf16 %v437, %v433
    %v462 = vpack.c.bf16 %v438, %v434
    %v463 = vpack.c.bf16 %v443, %v439
    %v464 = vpack.c.bf16 %v444, %v440
    %v465 = vpack.c.bf16 %v445, %v441
    %v466 = vpack.c.bf16 %v446, %v442
    %v467 = vpack.c.bf16 %v447, %v447
    %v468 = vpack.c.bf16 %v448, %v448
    %v469 = vpack.c.bf16 %v449, %v449
    %v470 = vpack.c.bf16 %v450, %v450
    %v471 = vld [vmem:[%s2] sm:$0xf]
    %v472 = vld [vmem:[%s5] sm:$0xff]
    %474 = vset.pattern.permute.xlu0 0
    %475 = vperm.xlu0 %474, %v472
    %v476 = vpop.permute.xlu0 %475
    %vm478 = vcmask 588800
    %v480 = vsel %vm478, %v471, 0
    %vm482 = vcmask 1043456
    %v484 = vsel %vm482, %v467, 0
    %v487 = vsel %vm482, %v468, 0
    %v490 = vsel %vm482, %v469, 0
    %v493 = vsel %vm482, %v470, 0
    %495 = vmatprep.subr.bf16.mxu0 0
    %496 = vmatpush1.bf16.msra.mxu0 0
    %497 = vmatprep.subr.bf16.mxu0 0
    %498 = vmatpush1.bf16.msra.mxu0 0
    %499 = vmatprep.subr.bf16.mxu0 0
    %500 = vmatpush1.bf16.msra.mxu0 0
    %501 = vmatprep.subr.bf16.mxu0 %v487
    %502 = vmatpush1.bf16.msra.mxu0 %v484
    %503 = vmatprep.subr.bf16.mxu0 %v464
    %504 = vmatpush1.bf16.msra.mxu0 %v463
    %505 = vmatprep.subr.bf16.mxu0 %v460
    %506 = vmatpush1.bf16.msra.mxu0 %v459
    %507 = vmatprep.subr.bf16.mxu0 %v456
    %508 = vmatpush1.bf16.msra.mxu0 %v455
    %509 = vmatprep.subr.bf16.mxu0 %v452
    %510 = vmatpush1.bf16.msra.mxu0 %v451
    %511 = vmatprep.subr.bf16.mxu0 0
    %512 = vmatpush2.bf16.msra.mxu0 0
    %513 = vmatprep.subr.bf16.mxu0 0
    %514 = vmatpush2.bf16.msra.mxu0 0
    %515 = vmatprep.subr.bf16.mxu0 0
    %516 = vmatpush2.bf16.msra.mxu0 0
    %517 = vmatprep.subr.bf16.mxu0 0
    %518 = vmatpush2.bf16.msra.mxu0 0
    %519 = vmatprep.subr.bf16.mxu0 0
    %520 = vmatpush2.bf16.msra.mxu0 0
    %521 = vmatprep.subr.bf16.mxu0 0
    %522 = vmatpush2.bf16.msra.mxu0 0
    %523 = vmatprep.subr.bf16.mxu0 0
    %524 = vmatpush2.bf16.msra.mxu0 0
    %525 = vmatprep.subr.bf16.mxu0 0
    %526 = vmatpush2.bf16.msra.mxu0 0
    %527 = vmatprep.mubr.bf16.mxu0 0
    %528 = vmatmul.mubr.bf16.gmra.mxu0 %v480
    %v529 = vpop.f32.mrf.mxu0
    %v530 = vadd.f32 %v476, %v529
    %v531 = vpop.f32.mrf.mxu0
    %v532 = vadd.f32 %v476, %v531
    %v533 = vpop.f32.mrf.mxu0
    %v534 = vpop.f32.mrf.mxu0
    %535 = vdwg.mxu0
    %536 = vmatprep.subr.bf16.mxu0 0
    %537 = vmatpush1.bf16.msra.mxu0 0
    %538 = vmatprep.subr.bf16.mxu0 0
    %539 = vmatpush1.bf16.msra.mxu0 0
    %540 = vmatprep.subr.bf16.mxu0 0
    %541 = vmatpush1.bf16.msra.mxu0 0
    %542 = vmatprep.subr.bf16.mxu0 %v493
    %543 = vmatpush1.bf16.msra.mxu0 %v490
    %544 = vmatprep.subr.bf16.mxu0 %v466
    %545 = vmatpush1.bf16.msra.mxu0 %v465
    %546 = vmatprep.subr.bf16.mxu0 %v462
    %547 = vmatpush1.bf16.msra.mxu0 %v461
    %548 = vmatprep.subr.bf16.mxu0 %v458
    %549 = vmatpush1.bf16.msra.mxu0 %v457
    %550 = vmatprep.subr.bf16.mxu0 %v454
    %551 = vmatpush1.bf16.msra.mxu0 %v453
    %552 = vmatprep.subr.bf16.mxu0 0
    %553 = vmatpush2.bf16.msra.mxu0 0
    %554 = vmatprep.subr.bf16.mxu0 0
    %555 = vmatpush2.bf16.msra.mxu0 0
    %556 = vmatprep.subr.bf16.mxu0 0
    %557 = vmatpush2.bf16.msra.mxu0 0
    %558 = vmatprep.subr.bf16.mxu0 0
    %559 = vmatpush2.bf16.msra.mxu0 0
    %560 = vmatprep.subr.bf16.mxu0 0
    %561 = vmatpush2.bf16.msra.mxu0 0
    %562 = vmatprep.subr.bf16.mxu0 0
    %563 = vmatpush2.bf16.msra.mxu0 0
    %564 = vmatprep.subr.bf16.mxu0 0
    %565 = vmatpush2.bf16.msra.mxu0 0
    %566 = vmatprep.subr.bf16.mxu0 0
    %567 = vmatpush2.bf16.msra.mxu0 0
    %568 = vmatprep.mubr.bf16.mxu0 0
    %569 = vmatmul.mubr.bf16.gmra.mxu0 %v480
    %v570 = vpop.f32.mrf.mxu0
    %v571 = vadd.f32 %v476, %v570
    %v572 = vpop.f32.mrf.mxu0
    %v573 = vadd.f32 %v476, %v572
    %v574 = vpop.f32.mrf.mxu0
    %v575 = vpop.f32.mrf.mxu0
    %576 = vdwg.mxu0
    %v577 = vmax.f32 %v530, 0.0
    %v578 = vmax.f32 %v532, 0.0
    %v579 = vmax.f32 %v571, 0.0
    %v580 = vmax.f32 %v573, 0.0
    %581 = vrot.lane.b32.xlu0 %v577, 17
    %v582 = vpop.permute.xlu0 %581
    %583 = vrot.lane.b32.xlu0 %v578, 17
    %v584 = vpop.permute.xlu0 %583
    %585 = vrot.lane.b32.xlu0 %v579, 17
    %v586 = vpop.permute.xlu0 %585
    %587 = vrot.lane.b32.xlu0 %v580, 17
    %v588 = vpop.permute.xlu0 %587
    %v589 = vsel %vm83, %v586, %v588
    %v590 = vsel %vm83, %v584, %v586
    %v591 = vsel %vm83, %v582, %v584
    %v592 = vsel %vm83, %v588, %v582
    %v593 = vmul.f32 %v592, %v92
    %v594 = vmul.f32 %v591, %v96
    %v595 = vmul.f32 %v590, %v100
    %v596 = vmul.f32 %v589, %v104
    %597 = vst [vmem:[#allocation2] sm:$0xff] %v593
    %598 = vst [vmem:[#allocation2 + $0x8] sm:$0xff] %v594
    %599 = vst [vmem:[#allocation2 + $0x10] sm:$0xff] %v595
    %600 = vst [vmem:[#allocation2 + $0x18] sm:$0xff] %v596
    %601 = vrot.lane.b32.xlu0 %v577, 16
    %v602 = vpop.permute.xlu0 %601
    %603 = vrot.lane.b32.xlu0 %v578, 16
    %v604 = vpop.permute.xlu0 %603
    %605 = vrot.lane.b32.xlu0 %v579, 16
    %v606 = vpop.permute.xlu0 %605
    %607 = vrot.lane.b32.xlu0 %v580, 16
    %v608 = vpop.permute.xlu0 %607
    %v609 = vsel %vm125, %v606, %v608
    %v610 = vsel %vm125, %v604, %v606
    %v611 = vsel %vm125, %v602, %v604
    %v612 = vsel %vm125, %v608, %v602
    %v613 = vmul.f32 %v612, %v134
    %v614 = vmul.f32 %v611, %v138
    %v615 = vmul.f32 %v610, %v142
    %v616 = vmul.f32 %v609, %v146
    %617 = vst [vmem:[#allocation2 + $0x20] sm:$0xff] %v613
    %618 = vst [vmem:[#allocation2 + $0x28] sm:$0xff] %v614
    %619 = vst [vmem:[#allocation2 + $0x30] sm:$0xff] %v615
    %620 = vst [vmem:[#allocation2 + $0x38] sm:$0xff] %v616
    %621 = vrot.lane.b32.xlu0 %v577, 15
    %v622 = vpop.permute.xlu0 %621
    %623 = vrot.lane.b32.xlu0 %v578, 15
    %v624 = vpop.permute.xlu0 %623
    %625 = vrot.lane.b32.xlu0 %v579, 15
    %v626 = vpop.permute.xlu0 %625
    %627 = vrot.lane.b32.xlu0 %v580, 15
    %v628 = vpop.permute.xlu0 %627
    %v629 = vsel %vm167, %v626, %v628
    %v630 = vsel %vm167, %v624, %v626
    %v631 = vsel %vm167, %v622, %v624
    %v632 = vsel %vm167, %v628, %v622
    %v633 = vmul.f32 %v632, %v176
    %v634 = vmul.f32 %v631, %v180
    %v635 = vmul.f32 %v630, %v184
    %v636 = vmul.f32 %v629, %v188
    %637 = vst [vmem:[#allocation2 + $0x40] sm:$0xff] %v633
    %638 = vst [vmem:[#allocation2 + $0x48] sm:$0xff] %v634
    %639 = vst [vmem:[#allocation2 + $0x50] sm:$0xff] %v635
    %640 = vst [vmem:[#allocation2 + $0x58] sm:$0xff] %v636
    %641 = vrot.lane.b32.xlu0 %v577, 1
    %v642 = vpop.permute.xlu0 %641
    %643 = vrot.lane.b32.xlu0 %v578, 1
    %v644 = vpop.permute.xlu0 %643
    %645 = vrot.lane.b32.xlu0 %v579, 1
    %v646 = vpop.permute.xlu0 %645
    %647 = vrot.lane.b32.xlu0 %v580, 1
    %v648 = vpop.permute.xlu0 %647
    %v649 = vsel %vm209, %v646, %v648
    %v650 = vsel %vm209, %v644, %v646
    %v651 = vsel %vm209, %v642, %v644
    %v652 = vsel %vm209, %v648, %v642
    %v653 = vmul.f32 %v652, %v218
    %v654 = vmul.f32 %v651, %v222
    %v655 = vmul.f32 %v650, %v226
    %v656 = vmul.f32 %v649, %v230
    %657 = vst [vmem:[#allocation2 + $0x60] sm:$0xff] %v653
    %658 = vst [vmem:[#allocation2 + $0x68] sm:$0xff] %v654
    %659 = vst [vmem:[#allocation2 + $0x70] sm:$0xff] %v655
    %660 = vst [vmem:[#allocation2 + $0x78] sm:$0xff] %v656
    %661 = vst [vmem:[#allocation2 + $0x80] sm:$0xff] %v577
    %662 = vst [vmem:[#allocation2 + $0x88] sm:$0xff] %v578
    %663 = vst [vmem:[#allocation2 + $0x90] sm:$0xff] %v579
    %664 = vst [vmem:[#allocation2 + $0x98] sm:$0xff] %v580
    %665 = vrot.lane.b32.xlu0 %v577, 127
    %v666 = vpop.permute.xlu0 %665
    %667 = vrot.lane.b32.xlu0 %v578, 127
    %v668 = vpop.permute.xlu0 %667
    %669 = vrot.lane.b32.xlu0 %v579, 127
    %v670 = vpop.permute.xlu0 %669
    %671 = vrot.lane.b32.xlu0 %v580, 127
    %v672 = vpop.permute.xlu0 %671
    %v673 = vsel %vm255, %v670, %v672
    %v674 = vsel %vm255, %v668, %v670
    %v675 = vsel %vm255, %v666, %v668
    %v676 = vsel %vm255, %v672, %v666
    %v677 = vmul.f32 %v675, %v264
    %v678 = vmul.f32 %v674, %v268
    %v679 = vmul.f32 %v673, %v272
    %v680 = vmul.f32 %v676, %v276
    %681 = vst [vmem:[#allocation2 + $0xa0] sm:$0xff] %v677
    %682 = vst [vmem:[#allocation2 + $0xa8] sm:$0xff] %v678
    %683 = vst [vmem:[#allocation2 + $0xb0] sm:$0xff] %v679
    %684 = vst [vmem:[#allocation2 + $0xb8] sm:$0xff] %v680
    %685 = vrot.lane.b32.xlu0 %v577, 113
    %v686 = vpop.permute.xlu0 %685
    %687 = vrot.lane.b32.xlu0 %v578, 113
    %v688 = vpop.permute.xlu0 %687
    %689 = vrot.lane.b32.xlu0 %v579, 113
    %v690 = vpop.permute.xlu0 %689
    %691 = vrot.lane.b32.xlu0 %v580, 113
    %v692 = vpop.permute.xlu0 %691
    %v693 = vsel %vm297, %v690, %v692
    %v694 = vsel %vm297, %v688, %v690
    %v695 = vsel %vm297, %v686, %v688
    %v696 = vsel %vm297, %v692, %v686
    %v697 = vmul.f32 %v695, %v306
    %v698 = vmul.f32 %v694, %v310
    %v699 = vmul.f32 %v693, %v314
    %v700 = vmul.f32 %v696, %v318
    %701 = vst [vmem:[#allocation2 + $0xc0] sm:$0xff] %v697
    %702 = vst [vmem:[#allocation2 + $0xc8] sm:$0xff] %v698
    %703 = vst [vmem:[#allocation2 + $0xd0] sm:$0xff] %v699
    %704 = vst [vmem:[#allocation2 + $0xd8] sm:$0xff] %v700
    %705 = vrot.lane.b32.xlu0 %v577, 112
    %v706 = vpop.permute.xlu0 %705
    %707 = vrot.lane.b32.xlu0 %v578, 112
    %v708 = vpop.permute.xlu0 %707
    %709 = vrot.lane.b32.xlu0 %v579, 112
    %v710 = vpop.permute.xlu0 %709
    %711 = vrot.lane.b32.xlu0 %v580, 112
    %v712 = vpop.permute.xlu0 %711
    %v713 = vsel %vm339, %v710, %v712
    %v714 = vsel %vm339, %v708, %v710
    %v715 = vsel %vm339, %v706, %v708
    %v716 = vsel %vm339, %v712, %v706
    %v717 = vmul.f32 %v715, %v348
    %v718 = vmul.f32 %v714, %v352
    %v719 = vmul.f32 %v713, %v356
    %v720 = vmul.f32 %v716, %v360
    %721 = vst [vmem:[#allocation2 + $0xe0] sm:$0xff] %v717
    %722 = vst [vmem:[#allocation2 + $0xe8] sm:$0xff] %v718
    %723 = vst [vmem:[#allocation2 + $0xf0] sm:$0xff] %v719
    %724 = vst [vmem:[#allocation2 + $0xf8] sm:$0xff] %v720
    %725 = vrot.lane.b32.xlu0 %v577, 111
    %v726 = vpop.permute.xlu0 %725
    %727 = vrot.lane.b32.xlu0 %v578, 111
    %v728 = vpop.permute.xlu0 %727
    %729 = vrot.lane.b32.xlu0 %v579, 111
    %v730 = vpop.permute.xlu0 %729
    %731 = vrot.lane.b32.xlu0 %v580, 111
    %v732 = vpop.permute.xlu0 %731
    %v733 = vsel %vm381, %v730, %v732
    %v734 = vsel %vm381, %v728, %v730
    %v735 = vsel %vm381, %v726, %v728
    %v736 = vsel %vm381, %v732, %v726
    %v737 = vmul.f32 %v735, %v390
    %v738 = vmul.f32 %v734, %v394
    %v739 = vmul.f32 %v733, %v398
    %v740 = vmul.f32 %v736, %v402
    %741 = vst [vmem:[#allocation2 + $0x100] sm:$0xff] %v737
    %742 = vst [vmem:[#allocation2 + $0x108] sm:$0xff] %v738
    %743 = vst [vmem:[#allocation2 + $0x110] sm:$0xff] %v739
    %744 = vst [vmem:[#allocation2 + $0x118] sm:$0xff] %v740
    %v745 = vld [vmem:[#allocation2] sm:$0xff]
    %v746 = vld [vmem:[#allocation2 + $0x8] sm:$0xff]
    %v747 = vld [vmem:[#allocation2 + $0x10] sm:$0xff]
    %v748 = vld [vmem:[#allocation2 + $0x18] sm:$0xff]
    %v749 = vld [vmem:[#allocation2 + $0x20] sm:$0xff]
    %v750 = vld [vmem:[#allocation2 + $0x28] sm:$0xff]
    %v751 = vld [vmem:[#allocation2 + $0x30] sm:$0xff]
    %v752 = vld [vmem:[#allocation2 + $0x38] sm:$0xff]
    %v753 = vld [vmem:[#allocation2 + $0x40] sm:$0xff]
    %v754 = vld [vmem:[#allocation2 + $0x48] sm:$0xff]
    %v755 = vld [vmem:[#allocation2 + $0x50] sm:$0xff]
    %v756 = vld [vmem:[#allocation2 + $0x58] sm:$0xff]
    %v757 = vld [vmem:[#allocation2 + $0x60] sm:$0xff]
    %v758 = vld [vmem:[#allocation2 + $0x68] sm:$0xff]
    %v759 = vld [vmem:[#allocation2 + $0x70] sm:$0xff]
    %v760 = vld [vmem:[#allocation2 + $0x78] sm:$0xff]
    %v761 = vld [vmem:[#allocation2 + $0x80] sm:$0xff]
    %v762 = vld [vmem:[#allocation2 + $0x88] sm:$0xff]
    %v763 = vld [vmem:[#allocation2 + $0x90] sm:$0xff]
    %v764 = vld [vmem:[#allocation2 + $0x98] sm:$0xff]
    %v765 = vld [vmem:[#allocation2 + $0xa0] sm:$0xff]
    %v766 = vld [vmem:[#allocation2 + $0xa8] sm:$0xff]
    %v767 = vld [vmem:[#allocation2 + $0xb0] sm:$0xff]
    %v768 = vld [vmem:[#allocation2 + $0xb8] sm:$0xff]
    %v769 = vld [vmem:[#allocation2 + $0xc0] sm:$0xff]
    %v770 = vld [vmem:[#allocation2 + $0xc8] sm:$0xff]
    %v771 = vld [vmem:[#allocation2 + $0xd0] sm:$0xff]
    %v772 = vld [vmem:[#allocation2 + $0xd8] sm:$0xff]
    %v773 = vld [vmem:[#allocation2 + $0xe0] sm:$0xff]
    %v774 = vld [vmem:[#allocation2 + $0xe8] sm:$0xff]
    %v775 = vld [vmem:[#allocation2 + $0xf0] sm:$0xff]
    %v776 = vld [vmem:[#allocation2 + $0xf8] sm:$0xff]
    %v777 = vld [vmem:[#allocation2 + $0x100] sm:$0xff]
    %v778 = vld [vmem:[#allocation2 + $0x108] sm:$0xff]
    %v779 = vld [vmem:[#allocation2 + $0x110] sm:$0xff]
    %v780 = vld [vmem:[#allocation2 + $0x118] sm:$0xff]
    %v781 = vpack.c.bf16 %v749, %v745
    %v782 = vpack.c.bf16 %v750, %v746
    %v783 = vpack.c.bf16 %v751, %v747
    %v784 = vpack.c.bf16 %v752, %v748
    %v785 = vpack.c.bf16 %v757, %v753
    %v786 = vpack.c.bf16 %v758, %v754
    %v787 = vpack.c.bf16 %v759, %v755
    %v788 = vpack.c.bf16 %v760, %v756
    %v789 = vpack.c.bf16 %v765, %v761
    %v790 = vpack.c.bf16 %v766, %v762
    %v791 = vpack.c.bf16 %v767, %v763
    %v792 = vpack.c.bf16 %v768, %v764
    %v793 = vpack.c.bf16 %v773, %v769
    %v794 = vpack.c.bf16 %v774, %v770
    %v795 = vpack.c.bf16 %v775, %v771
    %v796 = vpack.c.bf16 %v776, %v772
    %v797 = vpack.c.bf16 %v777, %v777
    %v798 = vpack.c.bf16 %v778, %v778
    %v799 = vpack.c.bf16 %v779, %v779
    %v800 = vpack.c.bf16 %v780, %v780
    %v801 = vld [vmem:[%s3] sm:$0xf]
    %v802 = vld [vmem:[%s4] sm:$0xf]
    %v803 = vpack.c.bf16 %v69, %v69
    %v804 = vpack.c.bf16 %v70, %v70
    %v805 = vpack.c.bf16 %v71, %v71
    %v806 = vpack.c.bf16 %v72, %v72
    %vm807 = vcmask 64512
    %v809 = vsel %vm807, %v802, 0
    %v812 = vsel %vm482, %v803, 0
    %v815 = vsel %vm482, %v804, 0
    %v818 = vsel %vm482, %v805, 0
    %v821 = vsel %vm482, %v806, 0
    %823 = vmatprep.subr.bf16.mxu0 0
    %824 = vmatpush1.bf16.msra.mxu0 0
    %825 = vmatprep.subr.bf16.mxu0 0
    %826 = vmatpush1.bf16.msra.mxu0 0
    %827 = vmatprep.subr.bf16.mxu0 0
    %828 = vmatpush1.bf16.msra.mxu0 0
    %829 = vmatprep.subr.bf16.mxu0 0
    %830 = vmatpush1.bf16.msra.mxu0 0
    %831 = vmatprep.subr.bf16.mxu0 0
    %832 = vmatpush1.bf16.msra.mxu0 0
    %833 = vmatprep.subr.bf16.mxu0 0
    %834 = vmatpush1.bf16.msra.mxu0 0
    %835 = vmatprep.subr.bf16.mxu0 0
    %836 = vmatpush1.bf16.msra.mxu0 0
    %837 = vmatprep.subr.bf16.mxu0 %v815
    %838 = vmatpush1.bf16.msra.mxu0 %v812
    %839 = vmatprep.subr.bf16.mxu0 0
    %840 = vmatpush2.bf16.msra.mxu0 0
    %841 = vmatprep.subr.bf16.mxu0 0
    %842 = vmatpush2.bf16.msra.mxu0 0
    %843 = vmatprep.subr.bf16.mxu0 0
    %844 = vmatpush2.bf16.msra.mxu0 0
    %845 = vmatprep.subr.bf16.mxu0 0
    %846 = vmatpush2.bf16.msra.mxu0 0
    %847 = vmatprep.subr.bf16.mxu0 0
    %848 = vmatpush2.bf16.msra.mxu0 0
    %849 = vmatprep.subr.bf16.mxu0 0
    %850 = vmatpush2.bf16.msra.mxu0 0
    %851 = vmatprep.subr.bf16.mxu0 0
    %852 = vmatpush2.bf16.msra.mxu0 0
    %853 = vmatprep.subr.bf16.mxu0 0
    %854 = vmatpush2.bf16.msra.mxu0 0
    %855 = vmatprep.mubr.bf16.mxu0 0
    %856 = vmatmul.mubr.bf16.gmra.mxu0 %v809
    %v857 = vpop.f32.mrf.mxu0
    %v858 = vadd.f32 0.0, %v857
    %v859 = vpop.f32.mrf.mxu0
    %v860 = vadd.f32 0.0, %v859
    %v861 = vpop.f32.mrf.mxu0
    %v862 = vpop.f32.mrf.mxu0
    %863 = vdwg.mxu0
    %864 = vmatprep.subr.bf16.mxu0 0
    %865 = vmatpush1.bf16.msra.mxu0 0
    %866 = vmatprep.subr.bf16.mxu0 0
    %867 = vmatpush1.bf16.msra.mxu0 0
    %868 = vmatprep.subr.bf16.mxu0 0
    %869 = vmatpush1.bf16.msra.mxu0 0
    %870 = vmatprep.subr.bf16.mxu0 0
    %871 = vmatpush1.bf16.msra.mxu0 0
    %872 = vmatprep.subr.bf16.mxu0 0
    %873 = vmatpush1.bf16.msra.mxu0 0
    %874 = vmatprep.subr.bf16.mxu0 0
    %875 = vmatpush1.bf16.msra.mxu0 0
    %876 = vmatprep.subr.bf16.mxu0 0
    %877 = vmatpush1.bf16.msra.mxu0 0
    %878 = vmatprep.subr.bf16.mxu0 %v821
    %879 = vmatpush1.bf16.msra.mxu0 %v818
    %880 = vmatprep.subr.bf16.mxu0 0
    %881 = vmatpush2.bf16.msra.mxu0 0
    %882 = vmatprep.subr.bf16.mxu0 0
    %883 = vmatpush2.bf16.msra.mxu0 0
    %884 = vmatprep.subr.bf16.mxu0 0
    %885 = vmatpush2.bf16.msra.mxu0 0
    %886 = vmatprep.subr.bf16.mxu0 0
    %887 = vmatpush2.bf16.msra.mxu0 0
    %888 = vmatprep.subr.bf16.mxu0 0
    %889 = vmatpush2.bf16.msra.mxu0 0
    %890 = vmatprep.subr.bf16.mxu0 0
    %891 = vmatpush2.bf16.msra.mxu0 0
    %892 = vmatprep.subr.bf16.mxu0 0
    %893 = vmatpush2.bf16.msra.mxu0 0
    %894 = vmatprep.subr.bf16.mxu0 0
    %895 = vmatpush2.bf16.msra.mxu0 0
    %896 = vmatprep.mubr.bf16.mxu0 0
    %897 = vmatmul.mubr.bf16.gmra.mxu0 %v809
    %v898 = vpop.f32.mrf.mxu0
    %v899 = vadd.f32 0.0, %v898
    %v900 = vpop.f32.mrf.mxu0
    %v901 = vadd.f32 0.0, %v900
    %v902 = vpop.f32.mrf.mxu0
    %v903 = vpop.f32.mrf.mxu0
    %904 = vdwg.mxu0
    %v906 = vsel %vm478, %v801, 0
    %v909 = vsel %vm482, %v797, 0
    %v912 = vsel %vm482, %v798, 0
    %v915 = vsel %vm482, %v799, 0
    %v918 = vsel %vm482, %v800, 0
    %920 = vmatprep.subr.bf16.mxu0 0
    %921 = vmatpush1.bf16.msra.mxu0 0
    %922 = vmatprep.subr.bf16.mxu0 0
    %923 = vmatpush1.bf16.msra.mxu0 0
    %924 = vmatprep.subr.bf16.mxu0 0
    %925 = vmatpush1.bf16.msra.mxu0 0
    %926 = vmatprep.subr.bf16.mxu0 %v912
    %927 = vmatpush1.bf16.msra.mxu0 %v909
    %928 = vmatprep.subr.bf16.mxu0 %v794
    %929 = vmatpush1.bf16.msra.mxu0 %v793
    %930 = vmatprep.subr.bf16.mxu0 %v790
    %931 = vmatpush1.bf16.msra.mxu0 %v789
    %932 = vmatprep.subr.bf16.mxu0 %v786
    %933 = vmatpush1.bf16.msra.mxu0 %v785
    %934 = vmatprep.subr.bf16.mxu0 %v782
    %935 = vmatpush1.bf16.msra.mxu0 %v781
    %936 = vmatprep.subr.bf16.mxu0 0
    %937 = vmatpush2.bf16.msra.mxu0 0
    %938 = vmatprep.subr.bf16.mxu0 0
    %939 = vmatpush2.bf16.msra.mxu0 0
    %940 = vmatprep.subr.bf16.mxu0 0
    %941 = vmatpush2.bf16.msra.mxu0 0
    %942 = vmatprep.subr.bf16.mxu0 0
    %943 = vmatpush2.bf16.msra.mxu0 0
    %944 = vmatprep.subr.bf16.mxu0 0
    %945 = vmatpush2.bf16.msra.mxu0 0
    %946 = vmatprep.subr.bf16.mxu0 0
    %947 = vmatpush2.bf16.msra.mxu0 0
    %948 = vmatprep.subr.bf16.mxu0 0
    %949 = vmatpush2.bf16.msra.mxu0 0
    %950 = vmatprep.subr.bf16.mxu0 0
    %951 = vmatpush2.bf16.msra.mxu0 0
    %952 = vmatprep.mubr.bf16.mxu0 0
    %953 = vmatmul.mubr.bf16.gmra.mxu0 %v906
    %v954 = vpop.f32.mrf.mxu0
    %v955 = vadd.f32 %v858, %v954
    %v956 = vpop.f32.mrf.mxu0
    %v957 = vadd.f32 %v860, %v956
    %v958 = vpop.f32.mrf.mxu0
    %v959 = vpop.f32.mrf.mxu0
    %960 = vdwg.mxu0
    %961 = vmatprep.subr.bf16.mxu0 0
    %962 = vmatpush1.bf16.msra.mxu0 0
    %963 = vmatprep.subr.bf16.mxu0 0
    %964 = vmatpush1.bf16.msra.mxu0 0
    %965 = vmatprep.subr.bf16.mxu0 0
    %966 = vmatpush1.bf16.msra.mxu0 0
    %967 = vmatprep.subr.bf16.mxu0 %v918
    %968 = vmatpush1.bf16.msra.mxu0 %v915
    %969 = vmatprep.subr.bf16.mxu0 %v796
    %970 = vmatpush1.bf16.msra.mxu0 %v795
    %971 = vmatprep.subr.bf16.mxu0 %v792
    %972 = vmatpush1.bf16.msra.mxu0 %v791
    %973 = vmatprep.subr.bf16.mxu0 %v788
    %974 = vmatpush1.bf16.msra.mxu0 %v787
    %975 = vmatprep.subr.bf16.mxu0 %v784
    %976 = vmatpush1.bf16.msra.mxu0 %v783
    %977 = vmatprep.subr.bf16.mxu0 0
    %978 = vmatpush2.bf16.msra.mxu0 0
    %979 = vmatprep.subr.bf16.mxu0 0
    %980 = vmatpush2.bf16.msra.mxu0 0
    %981 = vmatprep.subr.bf16.mxu0 0
    %982 = vmatpush2.bf16.msra.mxu0 0
    %983 = vmatprep.subr.bf16.mxu0 0
    %984 = vmatpush2.bf16.msra.mxu0 0
    %985 = vmatprep.subr.bf16.mxu0 0
    %986 = vmatpush2.bf16.msra.mxu0 0
    %987 = vmatprep.subr.bf16.mxu0 0
    %988 = vmatpush2.bf16.msra.mxu0 0
    %989 = vmatprep.subr.bf16.mxu0 0
    %990 = vmatpush2.bf16.msra.mxu0 0
    %991 = vmatprep.subr.bf16.mxu0 0
    %992 = vmatpush2.bf16.msra.mxu0 0
    %993 = vmatprep.mubr.bf16.mxu0 0
    %994 = vmatmul.mubr.bf16.gmra.mxu0 %v906
    %v995 = vpop.f32.mrf.mxu0
    %v996 = vadd.f32 %v899, %v995
    %v997 = vpop.f32.mrf.mxu0
    %v998 = vadd.f32 %v901, %v997
    %v999 = vpop.f32.mrf.mxu0
    %v1000 = vpop.f32.mrf.mxu0
    %1001 = vdwg.mxu0
    %v1002 = vld [vmem:[%s6] sm:$0xff]
    %1004 = vset.pattern.permute.xlu0 0
    %1005 = vperm.xlu0 %1004, %v1002
    %v1006 = vpop.permute.xlu0 %1005
    %v1008 = vadd.f32 %v955, %v1006
    %v1009 = vadd.f32 %v957, %v1006
    %v1010 = vadd.f32 %v996, %v1006
    %v1011 = vadd.f32 %v998, %v1006
    %1012 = vst [vmem:[#allocation8] sm:$0xff] %v1008
    %1013 = vst [vmem:[#allocation8 + $0x8] sm:$0xff] %v1009
    %1014 = vst [vmem:[#allocation8 + $0x10] sm:$0xff] %v1010
    %1015 = vst [vmem:[#allocation8 + $0x18] sm:$0xff] %v1011
    // Predicated region
    $region38: #{tpu_custom_call.1} parent=1 // pred_check
      _
    $region39: #{tpu_custom_call.1} parent=1 // pred_check_branch
      %1017 = sbr.rel (0) target = $region41
    $region40: #{tpu_custom_call.1} parent=1 // pred_region
      %s1019 = ssub.s32 512, 512
      %1020 = vsyncadd [#allocation5], %s1019
      %s1022 = sshll.u32 [#allocation8], 4
      %s1023 = int_to_ptr.vmem [resolvable:$true] %s1022
      %1025 = dma.vmem_to_hbm [thread:$0]  %s1023, 512, %s7, [#allocation5]
    $region41: #{tpu_custom_call.1} parent=1 // pred_fallthru
      _
    // Predicated region
    $region42: #{tpu_custom_call.1} parent=1 // pred_check
      _
    $region43: #{tpu_custom_call.1} parent=1 // pred_check_branch
      %1027 = sbr.rel (0) target = $region45
    $region44: #{tpu_custom_call.1} parent=1 // pred_region
      %1028 = dma.done [#allocation5], 512
    $region45: #{tpu_custom_call.1} parent=1 // pred_fallthru
      _
    %1029 = vsyncpa [#allocation4], 1
    %1030 = vsyncpa [#allocation7], 1
    %1031 = vsyncpa [#allocation5], 1

</llo_original>
